<compile_context>
chip_gen: v7x
topology: tpu7x:2x2x1
jax: 0.10.0
libtpu: 0.0.40
codegen_flags: <defaults>
</compile_context>

<pallas_src>
import numpy as np
import jax
import jax.numpy as jnp
from jax.experimental import pallas as pl
from jax.experimental.pallas import tpu as pltpu


def _round_up(x, m):
    return (x + m - 1) // m * m


def ffm_pair_reduce_kernel(a_ref, b_ref, o_ref):
    # a_ref/b_ref: (tb, Kpad) bf16 pair slabs;  o_ref: (1, 1, tb) f32 (lane-dense).
    a = a_ref[...].astype(jnp.float32)   # upcast before multiply (v5e: no bf16 VPU)
    b = b_ref[...].astype(jnp.float32)
    o_ref[...] = jnp.sum(a * b, axis=1)[None, None, :]


def _choose_batch_tile(b_padded, k_lanes, elem_bytes, vmem_budget_bytes):
    """Largest multiple-of-8 batch tile s.t. 2 inputs x 2 pipeline buffers fit the budget."""
    per_row = 2 * 2 * k_lanes * elem_bytes
    tb = max(8, min((vmem_budget_bytes // max(per_row, 1)) // 8 * 8, 2048, b_padded))
    # Keep >= ~4 grid steps when the batch allows it so both v7x TensorCores get
    # work on the "parallel" axis (v5e/v6e single-TC unaffected).
    if b_padded // tb < 4 and b_padded >= 32:
        tb = max(8, (b_padded // 4) // 8 * 8)
    return tb


def ffm_interaction_sum(a2, b2, *, tb, vmem_limit_bytes):
    """Row-wise sum over lanes of a2*b2.  a2/b2: (Bp, Kpad) bf16 -> (Bp,) f32."""
    Bp, Kpad = a2.shape
    n_tiles = pl.cdiv(Bp, tb)   # Bp is padded to a tile multiple, so this is exact
    out = pl.pallas_call(
        ffm_pair_reduce_kernel,
        out_shape=jax.ShapeDtypeStruct((n_tiles, 1, tb), jnp.float32),
        grid=(n_tiles,),
        in_specs=[
            pl.BlockSpec((tb, Kpad), lambda i: (i, 0)),
            pl.BlockSpec((tb, Kpad), lambda i: (i, 0)),
        ],
        out_specs=pl.BlockSpec((1, 1, tb), lambda i: (i, 0, 0)),
        compiler_params=pltpu.CompilerParams(
            dimension_semantics=("parallel",),
            vmem_limit_bytes=vmem_limit_bytes),
    )(a2, b2)
    return out.reshape(Bp)


class FieldAwareFactorizationMachineModelPallas:
    # VMEM budget used for tile derivation: conservative enough for v7x (32 MiB
    # scoped / 64 MiB physical) and v5e's 16 MiB default, with double-buffer headroom.
    _VMEM_TILE_BUDGET = 12 << 20

    def __init__(self, field_dims, embed_dim, key):
        self.field_dims = tuple(int(d) for d in field_dims)
        self.num_fields = len(self.field_dims)
        self.embed_dim = int(embed_dim)
        self.offsets = jnp.asarray(
            np.concatenate(([0], np.cumsum(self.field_dims)[:-1])), dtype=jnp.int32)
        total = int(sum(self.field_dims))
        keys = jax.random.split(key, self.num_fields + 1)
        scale = 1.0 / np.sqrt(self.embed_dim)
        # One embedding table per field, each (sum(field_dims), embed_dim).
        # Stored bf16: the kernel is HBM-bound, so halving input bytes is the win;
        # all accumulation stays f32.
        self.embeddings = jnp.stack([
            jax.random.uniform(keys[k], (total, self.embed_dim), jnp.float32,
                               -scale, scale)
            for k in range(self.num_fields)
        ]).astype(jnp.bfloat16)                                  # (F, total, D) bf16
        # FeaturesLinear params — present in the torch __init__ but unused by forward().
        self.linear_w = jax.random.uniform(keys[-1], (total, 1), jnp.float32,
                                           -scale, scale)
        self.linear_b = jnp.zeros((1,), jnp.float32)
        # Upper-triangular pair index vectors (i < j): slabs are built pair-ordered,
        # so no F*F mask input and no zeroed lanes.
        pi, pj = np.triu_indices(self.num_fields, k=1)
        self.pair_i = jnp.asarray(pi.astype(np.int32))
        self.pair_j = jnp.asarray(pj.astype(np.int32))
        self.num_pairs = int(pi.shape[0])

    def _pair_slabs(self, x, x_val):
        """Gather the two pair-ordered (B, P, D) slabs directly (x_val folded in)."""
        idx = x.astype(jnp.int32) + self.offsets[None, :]        # (B, F)
        xv = x_val.astype(jnp.float32)
        # A[b,p,:] = table_{j_p}(feature i_p) * x_val[b, i_p]    (== xs[j][:, i])
        # B[b,p,:] = table_{i_p}(feature j_p) * x_val[b, j_p]    (== xs[i][:, j])
        ea = self.embeddings[self.pair_j[None, :], idx[:, self.pair_i], :]
        eb = self.embeddings[self.pair_i[None, :], idx[:, self.pair_j], :]
        a = (ea.astype(jnp.float32) * xv[:, self.pair_i, None]).astype(jnp.bfloat16)
        b = (eb.astype(jnp.float32) * xv[:, self.pair_j, None]).astype(jnp.bfloat16)
        return a, b                                              # (B, P, D) bf16

    def __call__(self, x_field, x, x_val=None):
        # Field of a feature column is its position; x_field kept for API parity.
        B = x.shape[0]
        if x_val is None:
            x_val = jnp.ones(x.shape, jnp.float32)
        a, b = self._pair_slabs(x, x_val)                        # (B, P, D) bf16
        K = self.num_pairs * self.embed_dim
        Kpad = _round_up(K, 128)                                 # lane-dense slab width
        tb = _choose_batch_tile(_round_up(B, 8), Kpad, 2, self._VMEM_TILE_BUDGET)
        Bp = _round_up(B, tb)                                    # pad batch: no dropped rows
        a2 = jnp.pad(a.reshape(B, K), ((0, Bp - B), (0, Kpad - K)))
        b2 = jnp.pad(b.reshape(B, K), ((0, Bp - B), (0, Kpad - K)))
        tile_bytes = 2 * 2 * tb * Kpad * 2 + 2 * tb * 4          # dbl-buffered inputs + out
        vmem_limit = int(min(max(4 * tile_bytes, 8 << 20), 32 << 20))
        out = ffm_interaction_sum(a2, b2, tb=tb, vmem_limit_bytes=vmem_limit)
        return out[:B]                                           # .squeeze(1) -> (B,)


def ref_forward(model, x, x_val):
    """Pure-JAX mirror of the PyTorch module (full f32 math on the stored tables)."""
    F = model.num_fields
    idx = x.astype(jnp.int32) + model.offsets[None, :]
    emb = model.embeddings.astype(jnp.float32)
    xs = [emb[k][idx] * x_val[..., None] for k in range(F)]
    terms = []
    for i in range(F - 1):
        for j in range(i + 1, F):
            terms.append(xs[j][:, i] * xs[i][:, j])
    ix = jnp.stack(terms, axis=1)                                # (B, P, D)
    ffm_term = jnp.sum(jnp.sum(ix, axis=1), axis=1, keepdims=True)
    return ffm_term[:, 0]


def ref_forward_bf16_factors(model, x, x_val):
    """Same math, but with the (embed * x_val) factors rounded to bf16 — exactly the
    values the kernel consumes.  Differences vs the kernel are f32 summation order only."""
    F = model.num_fields
    idx = x.astype(jnp.int32) + model.offsets[None, :]
    emb = model.embeddings.astype(jnp.float32)
    xs = [(emb[k][idx] * x_val[..., None]).astype(jnp.bfloat16).astype(jnp.float32)
          for k in range(F)]
    terms = []
    for i in range(F - 1):
        for j in range(i + 1, F):
            terms.append(xs[j][:, i] * xs[i][:, j])
    ix = jnp.stack(terms, axis=1)
    return jnp.sum(jnp.sum(ix, axis=1), axis=1)


if __name__ == "__main__":
    key = jax.random.PRNGKey(0)
    k_model, k_x, k_val = jax.random.split(key, 3)

    field_dims = [10, 20, 30, 40]   # F = 4 fields
    embed_dim = 8
    batch = 20                      # not a multiple of 8 -> exercises batch padding

    model = FieldAwareFactorizationMachineModelPallas(field_dims, embed_dim, k_model)
    F = len(field_dims)

    maxes = jnp.asarray(field_dims, jnp.float32)
    u = jax.random.uniform(k_x, (batch, F))
    x = (u * maxes[None, :]).astype(jnp.int32)                # per-field indices
    x_field = jnp.broadcast_to(
        jnp.arange(F, dtype=jnp.int32)[None, :], (batch, F))  # field of each column
    x_val = jax.random.uniform(k_val, (batch, F), jnp.float32, 0.5, 1.5)

    out = jax.block_until_ready(model(x_field, x, x_val))
    assert out.shape == (batch,)

    # Tight check: kernel vs a reference fed the identical bf16-quantized factors.
    ref_q = ref_forward_bf16_factors(model, x, x_val)
    np.testing.assert_allclose(np.asarray(out), np.asarray(ref_q),
                               rtol=1e-3, atol=1e-3)

    # Semantic check: kernel vs full-f32 module math (tolerance = bf16 factor rounding).
    ref = ref_forward(model, x, x_val)
    np.testing.assert_allclose(np.asarray(out), np.asarray(ref),
                               rtol=2e-2, atol=2e-2)

    print("KERNEL_OK")
</pallas_src>

<mosaic_0001>
module attributes {stable_mosaic.version = 11 : i64} {
  func.func @ffm_pair_reduce_kernel(%arg0: i32, %arg1: memref<24x128xbf16, #tpu.memory_space<vmem>>, %arg2: memref<24x128xbf16, #tpu.memory_space<vmem>>, %arg3: memref<1x1x24xf32, #tpu.memory_space<vmem>>) attributes {dimension_semantics = [#tpu.dimension_semantics<parallel>], iteration_bounds = array<i64: 1>, scalar_prefetch = 0 : i64, scratch_operands = 0 : i64, tpu.core_type = #tpu.core_type<tc>, window_params = [{transform_indices = @transform_0, window_bounds = array<i64: 24, 128>}, {transform_indices = @transform_1, window_bounds = array<i64: 24, 128>}, {transform_indices = @transform_2, window_bounds = array<i64: 1, 1, 24>}]} {
    %c0 = arith.constant 0 : index
    %c0_0 = arith.constant 0 : index
    %0 = vector.load %arg1[%c0, %c0_0] : memref<24x128xbf16, #tpu.memory_space<vmem>>, vector<24x128xbf16>
    %1 = arith.extf %0 : vector<24x128xbf16> to vector<24x128xf32>
    %c0_1 = arith.constant 0 : index
    %c0_2 = arith.constant 0 : index
    %2 = vector.load %arg2[%c0_1, %c0_2] : memref<24x128xbf16, #tpu.memory_space<vmem>>, vector<24x128xbf16>
    %3 = arith.extf %2 : vector<24x128xbf16> to vector<24x128xf32>
    %4 = arith.mulf %1, %3 : vector<24x128xf32>
    %cst = arith.constant dense<0.000000e+00> : vector<24xf32>
    %5 = vector.multi_reduction <add>, %4, %cst [1] : vector<24x128xf32> to vector<24xf32>
    %6 = vector.shape_cast %5 : vector<24xf32> to vector<1x1x24xf32>
    %c0_3 = arith.constant 0 : index
    %c0_4 = arith.constant 0 : index
    %c0_5 = arith.constant 0 : index
    %7 = vector.load %arg3[%c0_3, %c0_4, %c0_5] : memref<1x1x24xf32, #tpu.memory_space<vmem>>, vector<1x1x24xf32>
    tpu.vector_store %arg3[%c0_3, %c0_4, %c0_5], %6 {strides = array<i32>} : memref<1x1x24xf32, #tpu.memory_space<vmem>>, vector<1x1x24xf32>,
    return
  }
  func.func @transform_0(%arg0: i32) -> (i32, i32) {
    %c0_i32 = arith.constant 0 : i32
    %c0_i32_0 = arith.constant 0 : i32
    return %arg0, %c0_i32 : i32, i32
  }
  func.func @transform_1(%arg0: i32) -> (i32, i32) {
    %c0_i32 = arith.constant 0 : i32
    %c0_i32_0 = arith.constant 0 : i32
    return %arg0, %c0_i32 : i32, i32
  }
  func.func @transform_2(%arg0: i32) -> (i32, i32, i32) {
    %c0_i32 = arith.constant 0 : i32
    %c0_i32_0 = arith.constant 0 : i32
    %c0_i32_1 = arith.constant 0 : i32
    return %arg0, %c0_i32, %c0_i32_0 : i32, i32, i32
  }
}

</mosaic_0001>

<llo_original>
// kernel: tpu_custom_call.1
$region0: #{tpu_custom_call.1}
  #allocation0 [shape = 'u32[]', space=smem, size = 0x4, offset = 0x4, fixed_abs, tag = 'smem constant byte address 0x4 - core index']
  #allocation1 [shape = 'u32[144,128]{1,0:T(1,128)}', space=vmem, size = 0x12000, scoped, tag = 'internal scratch']
  %s0 = inlined_call_operand.hbm [shape: bf16[24,128], index: 0, kind: input, shape index: {}]
  %s1 = inlined_call_operand.hbm [shape: bf16[24,128], index: 1, kind: input, shape index: {}]
  %s2 = inlined_call_operand.hbm [shape: f32[1,1,24], index: 2, kind: output, shape index: {}]
  %s3 = sld [smem:[#allocation0]]
  $region26: #{tpu_custom_call.1} parent=0
    _
  %s5 = ssub.s32 1, %s3
  %s6 = scalar_select 0, %s5, %s3
  $region1: #{tpu_custom_call.1} parent=0
    #allocation2 [shape = 'u8[6144]{0}', space=vmem, size = 0x1800, scoped, tag = 'input window, operand 0, single buffered']
    #allocation3 [shape = 's32[1]{0}', space=sflag, size = 0x4, scoped, tag = 'scoped memory for tpu_custom_call.1']
    #allocation4 [shape = 's32[1]{0}', space=sflag, size = 0x4, scoped, tag = 'scoped memory for tpu_custom_call.1']
    #allocation5 [shape = 'u8[6144]{0}', space=vmem, size = 0x1800, scoped, tag = 'input window, operand 1, single buffered']
    #allocation6 [shape = 's32[1]{0}', space=sflag, size = 0x4, scoped, tag = 'scoped memory for tpu_custom_call.1']
    #allocation7 [shape = 'u8[512]{0}', space=vmem, size = 0x400, scoped, tag = 'output window, operand 0, single buffered']
    %7 = vsyncpa [#allocation3], 0
    %8 = vsyncpa [#allocation6], 0
    %9 = vsyncpa [#allocation4], 0
    // Predicated region
    $region2: #{tpu_custom_call.1} parent=1 // pred_check
      _
    $region3: #{tpu_custom_call.1} parent=1 // pred_check_branch
      %11 = sbr.rel (0) target = $region5
    $region4: #{tpu_custom_call.1} parent=1 // pred_region
      %s13 = ssub.s32 192, 192
      %14 = vsyncadd [#allocation3], %s13
      %s15 = sshll.u32 [#allocation2], 4
      %s16 = int_to_ptr.vmem [resolvable:$true] %s15
      %21 = dma.hbm_to_vmem [thread:$0]  %s0, 192, %s16, [#allocation3], 64, 64, 4
    $region5: #{tpu_custom_call.1} parent=1 // pred_fallthru
      _
    // Predicated region
    $region6: #{tpu_custom_call.1} parent=1 // pred_check
      _
    $region7: #{tpu_custom_call.1} parent=1 // pred_check_branch
      %23 = sbr.rel (0) target = $region9
    $region8: #{tpu_custom_call.1} parent=1 // pred_region
      %s25 = ssub.s32 192, 192
      %26 = vsyncadd [#allocation6], %s25
      %s27 = sshll.u32 [#allocation5], 4
      %s28 = int_to_ptr.vmem [resolvable:$true] %s27
      %33 = dma.hbm_to_vmem [thread:$0]  %s1, 192, %s28, [#allocation6], 64, 64, 4
    $region9: #{tpu_custom_call.1} parent=1 // pred_fallthru
      _
    // Predicated region
    $region10: #{tpu_custom_call.1} parent=1 // pred_check
      _
    $region11: #{tpu_custom_call.1} parent=1 // pred_check_branch
      %35 = sbr.rel (0) target = $region13
    $region12: #{tpu_custom_call.1} parent=1 // pred_region
      %36 = dma.done [#allocation3], 192
    $region13: #{tpu_custom_call.1} parent=1 // pred_fallthru
      _
    // Predicated region
    $region14: #{tpu_custom_call.1} parent=1 // pred_check
      _
    $region15: #{tpu_custom_call.1} parent=1 // pred_check_branch
      %38 = sbr.rel (0) target = $region17
    $region16: #{tpu_custom_call.1} parent=1 // pred_region
      %39 = dma.done [#allocation6], 192
    $region17: #{tpu_custom_call.1} parent=1 // pred_fallthru
      _
    %v40 = vld [vmem:[#allocation2] sm:$0xf]
    %v41 = vld [vmem:[#allocation2 + $0x4] sm:$0xf]
    %v42 = vld [vmem:[#allocation2 + $0x8] sm:$0xf]
    %v43 = vunpack.c.l.bf16 %v40
    %v44 = vunpack.c.l.bf16 %v41
    %v45 = vunpack.c.l.bf16 %v42
    %v46 = vld [vmem:[#allocation5] sm:$0xf]
    %v47 = vld [vmem:[#allocation5 + $0x4] sm:$0xf]
    %v48 = vld [vmem:[#allocation5 + $0x8] sm:$0xf]
    %v49 = vunpack.c.l.bf16 %v46
    %v50 = vunpack.c.l.bf16 %v47
    %v51 = vunpack.c.l.bf16 %v48
    %v52 = vmul.f32 %v43, %v49
    %v53 = vmul.f32 %v44, %v50
    %v54 = vmul.f32 %v45, %v51
    %55 = vadd.xlane.f32.xlu0 %v52
    %v56 = vpop.xlane.xlu0 %55
    %57 = vadd.xlane.f32.xlu0 %v53
    %v58 = vpop.xlane.xlu0 %57
    %59 = vadd.xlane.f32.xlu0 %v54
    %v60 = vpop.xlane.xlu0 %59
    %v64 = vlaneseq
    %v65 = vand.u32 %v64, 127
    %v66 = vlaneseq
    %v67 = vshrl.u32 %v66, 7
    %v68 = vsub.s32 %v65, %v67
    %v69 = vrot.slane %v56, %v68
    %v70 = vadd.s32 %v65, 4294967288
    %v71 = vlaneseq
    %v72 = vshrl.u32 %v71, 7
    %v73 = vsub.s32 %v70, %v72
    %v74 = vrot.slane %v58, %v73
    %vm75 = vcmask 130112
    %v76 = vsel %vm75, %v74, %v69
    %v77 = vadd.s32 %v65, 4294967280
    %v78 = vlaneseq
    %v79 = vshrl.u32 %v78, 7
    %v80 = vsub.s32 %v77, %v79
    %v81 = vrot.slane %v60, %v80
    %vm82 = vcmask 195712
    %v83 = vsel %vm82, %v81, %v76
    %vm85 = vcmask 188416
    %86 = vst.msk [vmem:[#allocation7] sm:$0x1] %vm85, %v83
    // Predicated region
    $region18: #{tpu_custom_call.1} parent=1 // pred_check
      _
    $region19: #{tpu_custom_call.1} parent=1 // pred_check_branch
      %88 = sbr.rel (0) target = $region21
    $region20: #{tpu_custom_call.1} parent=1 // pred_region
      %s90 = ssub.s32 16, 16
      %91 = vsyncadd [#allocation4], %s90
      %s93 = sshll.u32 [#allocation7], 4
      %s94 = int_to_ptr.vmem [resolvable:$true] %s93
      %96 = dma.vmem_to_hbm [thread:$0]  %s94, 16, %s2, [#allocation4]
    $region21: #{tpu_custom_call.1} parent=1 // pred_fallthru
      _
    // Predicated region
    $region22: #{tpu_custom_call.1} parent=1 // pred_check
      _
    $region23: #{tpu_custom_call.1} parent=1 // pred_check_branch
      %98 = sbr.rel (0) target = $region25
    $region24: #{tpu_custom_call.1} parent=1 // pred_region
      %99 = dma.done [#allocation4], 16
    $region25: #{tpu_custom_call.1} parent=1 // pred_fallthru
      _
    %100 = vsyncpa [#allocation3], 1
    %101 = vsyncpa [#allocation6], 1
    %102 = vsyncpa [#allocation4], 1

</llo_original>
